<compile_context>
chip_gen: v7x
topology: tpu7x:2x2x1
jax: 0.10.0
libtpu: 0.0.40
codegen_flags: <defaults>
</compile_context>

<pallas_src>
import jax
import jax.numpy as jnp
from jax import lax
from jax.experimental import pallas as pl
from jax.experimental.pallas import tpu as pltpu


# --------------------------------------------------------------------------
# Hardware-aware sizing helpers
# --------------------------------------------------------------------------
def _vmem_capacity_bytes():
    """Per-TensorCore VMEM capacity; conservative default if query fails."""
    try:
        cap = getattr(pltpu.get_tpu_info(), "vmem_capacity_bytes", None)
        if cap:
            return int(cap)
    except Exception:
        pass
    return 64 * 1024 * 1024          # v7x per-core size == safe lower bound


def _tile_budget_bytes(cap):
    # ~half of VMEM for resident data blocks: 64 MiB on v5e/v6e (128 MiB
    # parts), 32 MiB on v7x (64 MiB/core).  Leaves headroom for Mosaic scratch.
    return max(16 * 1024 * 1024, min(cap // 2, 64 * 1024 * 1024))


def _vmem_limit_bytes(cap):
    return int(min(cap * 3 // 4, 100 * 1024 * 1024))


def _round_up(x, m):
    return ((x + m - 1) // m) * m


# --------------------------------------------------------------------------
# Inverse-DFT matrices
# --------------------------------------------------------------------------
def _idft_matrix_c(n):
    """G[k, m] = exp(+2*pi*i*k*m/n) / n  (symmetric), complex64.

    NOTE: (k*m) % n is computed in int32, exact for n up to ~46k (fine for any
    realistic spatial size).
    """
    k = jnp.arange(n, dtype=jnp.int32)[:, None]
    m = jnp.arange(n, dtype=jnp.int32)[None, :]
    theta = (2.0 * jnp.pi / n) * ((k * m) % n).astype(jnp.float32)
    return lax.complex(jnp.cos(theta), jnp.sin(theta)) / n


# --------------------------------------------------------------------------
# Fused Kronecker path (small H*W) — single lane-dense MXU matmul per tile
# --------------------------------------------------------------------------
def _kron_matmul_kernel(x_ref, g_ref, out_ref):
    out_ref[...] = jnp.dot(x_ref[...], g_ref[...],
                           preferred_element_type=jnp.float32)


def _ifft2_real_fused(xr, xi, b, c, h, w, cap):
    bc = b * c
    hw = h * w
    complex_in = xi is not None

    # K = G_H (x) G_W  (symmetric), so  z_flat = x_flat @ K.
    k_mat = jnp.kron(_idft_matrix_c(h), _idft_matrix_c(w))        # (hw, hw) c64
    if complex_in:
        g = jnp.concatenate([jnp.real(k_mat), -jnp.imag(k_mat)], axis=0)
        x2 = jnp.concatenate([xr.reshape(bc, hw), xi.reshape(bc, hw)], axis=-1)
    else:
        # Real-input specialization: no zero imaginary plane is streamed.
        g = jnp.real(k_mat)
        x2 = xr.reshape(bc, hw)
    g = g.astype(jnp.float32)
    ncols = g.shape[0]                                            # hw or 2*hw

    # --- tile sizing (per-generation VMEM budget) ---
    budget = _tile_budget_bytes(cap)
    g_bytes = 2 * ncols * hw * 4            # constant G block (assume dbl-buf)
    per_row = (ncols + hw) * 4 * 2          # dbl-buffered input + output rows
    avail = max(budget - g_bytes, 0)
    bc8 = _round_up(bc, 8)
    tile = max(8, min(bc8, (avail // per_row) // 8 * 8))
    if bc8 >= 16:                           # keep grid >= 2 so v7x megacore splits
        tile = min(tile, max(8, _round_up((bc8 + 1) // 2, 8)))
    bc_pad = _round_up(bc8, tile)
    grid = (bc_pad // tile,)

    if bc_pad != bc:
        x2 = jnp.pad(x2, ((0, bc_pad - bc), (0, 0)))

    flops = 2 * bc_pad * ncols * hw
    bytes_accessed = (bc_pad * (ncols + hw) + ncols * hw) * 4

    out = pl.pallas_call(
        _kron_matmul_kernel,
        out_shape=jax.ShapeDtypeStruct((bc_pad, hw), jnp.float32),
        grid=grid,
        in_specs=[pl.BlockSpec((tile, ncols), lambda i: (i, 0)),
                  pl.BlockSpec((ncols, hw), lambda i: (0, 0))],
        out_specs=pl.BlockSpec((tile, hw), lambda i: (i, 0)),
        compiler_params=pltpu.CompilerParams(
            dimension_semantics=("parallel",),
            vmem_limit_bytes=_vmem_limit_bytes(cap)),
        cost_estimate=pl.CostEstimate(flops=flops, transcendentals=0,
                                      bytes_accessed=bytes_accessed),
    )(x2, g)

    return out[:bc].reshape(b, c, h, w)


# --------------------------------------------------------------------------
# Two-phase path (large H*W) — per-axis DFT matmuls, lane-dense (W, H) output
# --------------------------------------------------------------------------
def _twophase_kernel(xr_ref, xi_ref, gwr_ref, gwd_ref, gws_ref,
                     ghr_ref, ghi_ref, out_ref):
    bct, h, w = xr_ref.shape
    xr = xr_ref[...].reshape(bct * h, w)
    xi = xi_ref[...].reshape(bct * h, w)

    # W-axis inverse transform (full complex result), Gauss 3-multiplication.
    k1 = jnp.dot(xr + xi, gwr_ref[...], preferred_element_type=jnp.float32)
    k2 = jnp.dot(xr, gwd_ref[...], preferred_element_type=jnp.float32)
    k3 = jnp.dot(xi, gws_ref[...], preferred_element_type=jnp.float32)
    t_re = k1 - k3
    t_im = k1 + k2

    # H-axis inverse transform, real part only, contracted in (b, l, m) layout
    # (G_H is symmetric, so a right-multiply contracts over m).
    t_re_t = jnp.swapaxes(t_re.reshape(bct, h, w), 1, 2).reshape(bct * w, h)
    t_im_t = jnp.swapaxes(t_im.reshape(bct, h, w), 1, 2).reshape(bct * w, h)
    z_t = (jnp.dot(t_re_t, ghr_ref[...], preferred_element_type=jnp.float32)
           - jnp.dot(t_im_t, ghi_ref[...], preferred_element_type=jnp.float32))

    # Lane-dense store in (l, k) = (W, H) order; wrapper transposes back.
    out_ref[...] = z_t.reshape(bct, w, h)


def _ifft2_real_twophase(xr, xi, b, c, h, w, cap):
    bc = b * c
    if xi is None:
        # TODO(synk): large-spatial real-input path still streams a zero
        # imaginary plane (rare case; fused path handles real inputs natively).
        xi = jnp.zeros_like(xr)

    gw = _idft_matrix_c(w)
    gh = _idft_matrix_c(h)
    gw_re = jnp.real(gw).astype(jnp.float32)
    gw_im = jnp.imag(gw).astype(jnp.float32)
    gw_d = gw_im - gw_re                       # Gauss-trick precomputed matrices
    gw_s = gw_re + gw_im
    gh_re = jnp.real(gh).astype(jnp.float32)
    gh_im = jnp.imag(gh).astype(jnp.float32)

    # --- tile sizing: account for the resident DFT-matrix planes too ---
    budget = _tile_budget_bytes(cap)
    g_bytes = (3 * w * w + 2 * h * h) * 4 * 2
    per_row = 16 * h * w * 4                   # in/out blocks + temporaries
    avail = max(budget - g_bytes, per_row)
    tile = max(1, min(bc, avail // per_row))
    if bc >= 2:
        tile = min(tile, (bc + 1) // 2)        # grid >= 2: megacore can split
    bc_pad = _round_up(bc, tile)
    grid = (bc_pad // tile,)

    if bc_pad != bc:
        pad = ((0, bc_pad - bc), (0, 0), (0, 0))
        xr = jnp.pad(xr, pad)
        xi = jnp.pad(xi, pad)

    x_spec = pl.BlockSpec((tile, h, w), lambda i: (i, 0, 0))
    o_spec = pl.BlockSpec((tile, w, h), lambda i: (i, 0, 0))
    w_spec = pl.BlockSpec((w, w), lambda i: (0, 0))
    h_spec = pl.BlockSpec((h, h), lambda i: (0, 0))

    flops = bc_pad * h * w * (6 * w + 4 * h)
    bytes_accessed = 3 * bc_pad * h * w * 4 + (3 * w * w + 2 * h * h) * 4

    out = pl.pallas_call(
        _twophase_kernel,
        out_shape=jax.ShapeDtypeStruct((bc_pad, w, h), jnp.float32),
        grid=grid,
        in_specs=[x_spec, x_spec, w_spec, w_spec, w_spec, h_spec, h_spec],
        out_specs=o_spec,
        compiler_params=pltpu.CompilerParams(
            dimension_semantics=("parallel",),
            vmem_limit_bytes=_vmem_limit_bytes(cap)),
        cost_estimate=pl.CostEstimate(flops=flops, transcendentals=0,
                                      bytes_accessed=bytes_accessed),
    )(xr, xi, gw_re, gw_d, gw_s, gh_re, gh_im)

    return jnp.swapaxes(out[:bc], 1, 2).reshape(b, c, h, w)


# --------------------------------------------------------------------------
# Public entry point
# --------------------------------------------------------------------------
def inverse_fourier_transform_layer(x_ft):
    """Pallas TPU equivalent of torch.fft.ifftn(x_ft, dim=(-2, -1)).real."""
    b, c, h, w = x_ft.shape
    bc = b * c
    cap = _vmem_capacity_bytes()

    if jnp.issubdtype(x_ft.dtype, jnp.complexfloating):
        xr = jnp.real(x_ft).astype(jnp.float32).reshape(bc, h, w)
        xi = jnp.imag(x_ft).astype(jnp.float32).reshape(bc, h, w)
    else:
        xr = x_ft.astype(jnp.float32).reshape(bc, h, w)
        xi = None                      # real-input specialization

    # Small spatial dims: one Kronecker-fused, lane-dense MXU contraction.
    # Large spatial dims: the (HW x HW) Kronecker matrix would not fit VMEM,
    # so use the two-phase per-axis DFT kernel instead.
    if h * w <= 1024:
        return _ifft2_real_fused(xr, xi, b, c, h, w, cap)
    return _ifft2_real_twophase(xr, xi, b, c, h, w, cap)


if __name__ == "__main__":
    key = jax.random.PRNGKey(0)
    k_re, k_im = jax.random.split(key)
    shape = (2, 4, 16, 16)
    x_ft = lax.complex(jax.random.normal(k_re, shape, dtype=jnp.float32),
                       jax.random.normal(k_im, shape, dtype=jnp.float32))

    out = jax.jit(inverse_fourier_transform_layer)(x_ft)
    out = jax.block_until_ready(out)

    # Sanity check against the JAX reference inverse FFT.
    ref = jnp.real(jnp.fft.ifftn(x_ft, axes=(-2, -1)))
    assert out.shape == shape and out.dtype == jnp.float32
    assert jnp.max(jnp.abs(out - ref)) < 1e-4

    print("KERNEL_OK")
</pallas_src>

<mosaic_0001>
module attributes {stable_mosaic.version = 11 : i64} {
  func.func @_kron_matmul_kernel(%arg0: i32, %arg1: memref<8x512xf32, #tpu.memory_space<vmem>>, %arg2: memref<512x256xf32, #tpu.memory_space<vmem>>, %arg3: memref<8x256xf32, #tpu.memory_space<vmem>>) attributes {dimension_semantics = [#tpu.dimension_semantics<parallel>], iteration_bounds = array<i64: 1>, scalar_prefetch = 0 : i64, scratch_operands = 0 : i64, tpu.core_type = #tpu.core_type<tc>, window_params = [{transform_indices = @transform_0, window_bounds = array<i64: 8, 512>}, {pipeline_mode = #tpu.pipeline_mode<synchronous>, transform_indices = @transform_1, window_bounds = array<i64: 512, 256>}, {transform_indices = @transform_2, window_bounds = array<i64: 8, 256>}]} {
    %c0 = arith.constant 0 : index
    %c0_0 = arith.constant 0 : index
    %0 = vector.load %arg1[%c0, %c0_0] : memref<8x512xf32, #tpu.memory_space<vmem>>, vector<8x512xf32>
    %c0_1 = arith.constant 0 : index
    %c0_2 = arith.constant 0 : index
    %1 = vector.load %arg2[%c0_1, %c0_2] : memref<512x256xf32, #tpu.memory_space<vmem>>, vector<512x256xf32>
    %cst = arith.constant dense<0.000000e+00> : vector<8x256xf32>
    %2 = tpu.matmul %0, %1, %cst {dimension_numbers = #tpu.dot_dimension_numbers<[1], [0], [0], [1], [0, 0, 1, 1], [], []>} : vector<8x512xf32>, vector<512x256xf32>, vector<8x256xf32> -> vector<8x256xf32>
    %c0_3 = arith.constant 0 : index
    %c0_4 = arith.constant 0 : index
    %3 = vector.load %arg3[%c0_3, %c0_4] : memref<8x256xf32, #tpu.memory_space<vmem>>, vector<8x256xf32>
    tpu.vector_store %arg3[%c0_3, %c0_4], %2 {strides = array<i32>} : memref<8x256xf32, #tpu.memory_space<vmem>>, vector<8x256xf32>,
    return
  }
  func.func @transform_0(%arg0: i32) -> (i32, i32) {
    %c0_i32 = arith.constant 0 : i32
    %c0_i32_0 = arith.constant 0 : i32
    return %arg0, %c0_i32 : i32, i32
  }
  func.func @transform_1(%arg0: i32) -> (i32, i32) {
    %c0_i32 = arith.constant 0 : i32
    %c0_i32_0 = arith.constant 0 : i32
    %c0_i32_1 = arith.constant 0 : i32
    return %c0_i32, %c0_i32_0 : i32, i32
  }
  func.func @transform_2(%arg0: i32) -> (i32, i32) {
    %c0_i32 = arith.constant 0 : i32
    %c0_i32_0 = arith.constant 0 : i32
    return %arg0, %c0_i32 : i32, i32
  }
}

</mosaic_0001>

<llo_original>
// kernel: custom-call
$region0: #{custom-call}
  %s0 = inlined_call_operand.hbm [shape: c64[2,4,16,16], index: 0, kind: input, shape index: {}]
  %s1 = inlined_call_operand.vmem [shape: f32[2,4,16,16], index: 1, kind: output, shape index: {}]
  $region1: #{custom-call} parent=0
    #allocation0 [shape = 's32[1]{0}', space=sflag, size = 0x4, scoped, tag = 'scoped memory for custom-call']
    %2 = vsyncpa [#allocation0], 0
    %s3 = sshll.u32 %s1, 4
    %s4 = int_to_ptr.vmem [resolvable:$true] %s3
    %6 = dma.hbm_to_vmem [thread:$0]  %s0, 2048, %s4, [#allocation0]
    %7 = dma.done [#allocation0], 2048
    %8 = vsyncpa [#allocation0], 1

// kernel: custom-call.1
$region0: #{custom-call.1}
  %s0 = inlined_call_operand.hbm [shape: c64[2,4,16,16], index: 0, kind: input, shape index: {}]
  %s1 = inlined_call_operand.vmem [shape: f32[2,4,16,16], index: 1, kind: output, shape index: {}]
  %s2 = scalar_lea.hbm %s0, 2048
  $region1: #{custom-call.1} parent=0
    #allocation0 [shape = 's32[1]{0}', space=sflag, size = 0x4, scoped, tag = 'scoped memory for custom-call.1']
    %3 = vsyncpa [#allocation0], 0
    %s4 = sshll.u32 %s1, 4
    %s5 = int_to_ptr.vmem [resolvable:$true] %s4
    %7 = dma.hbm_to_vmem [thread:$0]  %s2, 2048, %s5, [#allocation0]
    %8 = dma.done [#allocation0], 2048
    %9 = vsyncpa [#allocation0], 1

// kernel: inverse_fourier_transform_layer.1
$region0: #{inverse_fourier_transform_layer.1}
  #allocation0 [shape = 'u32[]', space=smem, size = 0x4, offset = 0x4, fixed_abs, tag = 'smem constant byte address 0x4 - core index']
  #allocation1 [shape = 'u32[144,128]{1,0:T(1,128)}', space=vmem, size = 0x12000, scoped, tag = 'internal scratch']
  %s0 = inlined_call_operand.vmem [shape: f32[8,512], index: 0, kind: input, shape index: {}]
  %s1 = inlined_call_operand.vmem [shape: f32[512,256], index: 1, kind: input, shape index: {}]
  %s2 = inlined_call_operand.vmem [shape: f32[8,256], index: 2, kind: output, shape index: {}]
  %s3 = sld [smem:[#allocation0]]
  $region18: #{inverse_fourier_transform_layer.1} parent=0
    _
  %s5 = ssub.s32 1, %s3
  %s6 = scalar_select 0, %s5, %s3
  // Predicated region
  $region2: #{inverse_fourier_transform_layer.1} parent=0 // pred_check
    _
  $region3: #{inverse_fourier_transform_layer.1} parent=0 // pred_check_branch
    %8 = sbr.rel (0) target = $region5
  $region4: #{inverse_fourier_transform_layer.1} parent=0 // pred_region
    _
  $region5: #{inverse_fourier_transform_layer.1} parent=0 // pred_fallthru
    _
  // Predicated region
  $region6: #{inverse_fourier_transform_layer.1} parent=0 // pred_check
    _
  $region7: #{inverse_fourier_transform_layer.1} parent=0 // pred_check_branch
    %10 = sbr.rel (0) target = $region9
  $region8: #{inverse_fourier_transform_layer.1} parent=0 // pred_region
    _
  $region9: #{inverse_fourier_transform_layer.1} parent=0 // pred_fallthru
    _
  %v11 = vld [vmem:[%s0] sm:$0xff]
  %v12 = vld [vmem:[%s0 + $0x8] sm:$0xff]
  %v13 = vld [vmem:[%s0 + $0x10] sm:$0xff]
  %v14 = vld [vmem:[%s0 + $0x18] sm:$0xff]
  %v15 = vld [vmem:[%s1] sm:$0xff]
  %v16 = vld [vmem:[%s1 + $0x8] sm:$0xff]
  %v17 = vld [vmem:[%s1 + $0x10] sm:$0xff]
  %v18 = vld [vmem:[%s1 + $0x18] sm:$0xff]
  %v19 = vld [vmem:[%s1 + $0x20] sm:$0xff]
  %v20 = vld [vmem:[%s1 + $0x28] sm:$0xff]
  %v21 = vld [vmem:[%s1 + $0x30] sm:$0xff]
  %v22 = vld [vmem:[%s1 + $0x38] sm:$0xff]
  %v23 = vld [vmem:[%s1 + $0x40] sm:$0xff]
  %v24 = vld [vmem:[%s1 + $0x48] sm:$0xff]
  %v25 = vld [vmem:[%s1 + $0x50] sm:$0xff]
  %v26 = vld [vmem:[%s1 + $0x58] sm:$0xff]
  %v27 = vld [vmem:[%s1 + $0x60] sm:$0xff]
  %v28 = vld [vmem:[%s1 + $0x68] sm:$0xff]
  %v29 = vld [vmem:[%s1 + $0x70] sm:$0xff]
  %v30 = vld [vmem:[%s1 + $0x78] sm:$0xff]
  %v31 = vld [vmem:[%s1 + $0x80] sm:$0xff]
  %v32 = vld [vmem:[%s1 + $0x88] sm:$0xff]
  %v33 = vld [vmem:[%s1 + $0x90] sm:$0xff]
  %v34 = vld [vmem:[%s1 + $0x98] sm:$0xff]
  %v35 = vld [vmem:[%s1 + $0xa0] sm:$0xff]
  %v36 = vld [vmem:[%s1 + $0xa8] sm:$0xff]
  %v37 = vld [vmem:[%s1 + $0xb0] sm:$0xff]
  %v38 = vld [vmem:[%s1 + $0xb8] sm:$0xff]
  %v39 = vld [vmem:[%s1 + $0xc0] sm:$0xff]
  %v40 = vld [vmem:[%s1 + $0xc8] sm:$0xff]
  %v41 = vld [vmem:[%s1 + $0xd0] sm:$0xff]
  %v42 = vld [vmem:[%s1 + $0xd8] sm:$0xff]
  %v43 = vld [vmem:[%s1 + $0xe0] sm:$0xff]
  %v44 = vld [vmem:[%s1 + $0xe8] sm:$0xff]
  %v45 = vld [vmem:[%s1 + $0xf0] sm:$0xff]
  %v46 = vld [vmem:[%s1 + $0xf8] sm:$0xff]
  %v47 = vld [vmem:[%s1 + $0x100] sm:$0xff]
  %v48 = vld [vmem:[%s1 + $0x108] sm:$0xff]
  %v49 = vld [vmem:[%s1 + $0x110] sm:$0xff]
  %v50 = vld [vmem:[%s1 + $0x118] sm:$0xff]
  %v51 = vld [vmem:[%s1 + $0x120] sm:$0xff]
  %v52 = vld [vmem:[%s1 + $0x128] sm:$0xff]
  %v53 = vld [vmem:[%s1 + $0x130] sm:$0xff]
  %v54 = vld [vmem:[%s1 + $0x138] sm:$0xff]
  %v55 = vld [vmem:[%s1 + $0x140] sm:$0xff]
  %v56 = vld [vmem:[%s1 + $0x148] sm:$0xff]
  %v57 = vld [vmem:[%s1 + $0x150] sm:$0xff]
  %v58 = vld [vmem:[%s1 + $0x158] sm:$0xff]
  %v59 = vld [vmem:[%s1 + $0x160] sm:$0xff]
  %v60 = vld [vmem:[%s1 + $0x168] sm:$0xff]
  %v61 = vld [vmem:[%s1 + $0x170] sm:$0xff]
  %v62 = vld [vmem:[%s1 + $0x178] sm:$0xff]
  %v63 = vld [vmem:[%s1 + $0x180] sm:$0xff]
  %v64 = vld [vmem:[%s1 + $0x188] sm:$0xff]
  %v65 = vld [vmem:[%s1 + $0x190] sm:$0xff]
  %v66 = vld [vmem:[%s1 + $0x198] sm:$0xff]
  %v67 = vld [vmem:[%s1 + $0x1a0] sm:$0xff]
  %v68 = vld [vmem:[%s1 + $0x1a8] sm:$0xff]
  %v69 = vld [vmem:[%s1 + $0x1b0] sm:$0xff]
  %v70 = vld [vmem:[%s1 + $0x1b8] sm:$0xff]
  %v71 = vld [vmem:[%s1 + $0x1c0] sm:$0xff]
  %v72 = vld [vmem:[%s1 + $0x1c8] sm:$0xff]
  %v73 = vld [vmem:[%s1 + $0x1d0] sm:$0xff]
  %v74 = vld [vmem:[%s1 + $0x1d8] sm:$0xff]
  %v75 = vld [vmem:[%s1 + $0x1e0] sm:$0xff]
  %v76 = vld [vmem:[%s1 + $0x1e8] sm:$0xff]
  %v77 = vld [vmem:[%s1 + $0x1f0] sm:$0xff]
  %v78 = vld [vmem:[%s1 + $0x1f8] sm:$0xff]
  %v79 = vld [vmem:[%s1 + $0x200] sm:$0xff]
  %v80 = vld [vmem:[%s1 + $0x208] sm:$0xff]
  %v81 = vld [vmem:[%s1 + $0x210] sm:$0xff]
  %v82 = vld [vmem:[%s1 + $0x218] sm:$0xff]
  %v83 = vld [vmem:[%s1 + $0x220] sm:$0xff]
  %v84 = vld [vmem:[%s1 + $0x228] sm:$0xff]
  %v85 = vld [vmem:[%s1 + $0x230] sm:$0xff]
  %v86 = vld [vmem:[%s1 + $0x238] sm:$0xff]
  %v87 = vld [vmem:[%s1 + $0x240] sm:$0xff]
  %v88 = vld [vmem:[%s1 + $0x248] sm:$0xff]
  %v89 = vld [vmem:[%s1 + $0x250] sm:$0xff]
  %v90 = vld [vmem:[%s1 + $0x258] sm:$0xff]
  %v91 = vld [vmem:[%s1 + $0x260] sm:$0xff]
  %v92 = vld [vmem:[%s1 + $0x268] sm:$0xff]
  %v93 = vld [vmem:[%s1 + $0x270] sm:$0xff]
  %v94 = vld [vmem:[%s1 + $0x278] sm:$0xff]
  %v95 = vld [vmem:[%s1 + $0x280] sm:$0xff]
  %v96 = vld [vmem:[%s1 + $0x288] sm:$0xff]
  %v97 = vld [vmem:[%s1 + $0x290] sm:$0xff]
  %v98 = vld [vmem:[%s1 + $0x298] sm:$0xff]
  %v99 = vld [vmem:[%s1 + $0x2a0] sm:$0xff]
  %v100 = vld [vmem:[%s1 + $0x2a8] sm:$0xff]
  %v101 = vld [vmem:[%s1 + $0x2b0] sm:$0xff]
  %v102 = vld [vmem:[%s1 + $0x2b8] sm:$0xff]
  %v103 = vld [vmem:[%s1 + $0x2c0] sm:$0xff]
  %v104 = vld [vmem:[%s1 + $0x2c8] sm:$0xff]
  %v105 = vld [vmem:[%s1 + $0x2d0] sm:$0xff]
  %v106 = vld [vmem:[%s1 + $0x2d8] sm:$0xff]
  %v107 = vld [vmem:[%s1 + $0x2e0] sm:$0xff]
  %v108 = vld [vmem:[%s1 + $0x2e8] sm:$0xff]
  %v109 = vld [vmem:[%s1 + $0x2f0] sm:$0xff]
  %v110 = vld [vmem:[%s1 + $0x2f8] sm:$0xff]
  %v111 = vld [vmem:[%s1 + $0x300] sm:$0xff]
  %v112 = vld [vmem:[%s1 + $0x308] sm:$0xff]
  %v113 = vld [vmem:[%s1 + $0x310] sm:$0xff]
  %v114 = vld [vmem:[%s1 + $0x318] sm:$0xff]
  %v115 = vld [vmem:[%s1 + $0x320] sm:$0xff]
  %v116 = vld [vmem:[%s1 + $0x328] sm:$0xff]
  %v117 = vld [vmem:[%s1 + $0x330] sm:$0xff]
  %v118 = vld [vmem:[%s1 + $0x338] sm:$0xff]
  %v119 = vld [vmem:[%s1 + $0x340] sm:$0xff]
  %v120 = vld [vmem:[%s1 + $0x348] sm:$0xff]
  %v121 = vld [vmem:[%s1 + $0x350] sm:$0xff]
  %v122 = vld [vmem:[%s1 + $0x358] sm:$0xff]
  %v123 = vld [vmem:[%s1 + $0x360] sm:$0xff]
  %v124 = vld [vmem:[%s1 + $0x368] sm:$0xff]
  %v125 = vld [vmem:[%s1 + $0x370] sm:$0xff]
  %v126 = vld [vmem:[%s1 + $0x378] sm:$0xff]
  %v127 = vld [vmem:[%s1 + $0x380] sm:$0xff]
  %v128 = vld [vmem:[%s1 + $0x388] sm:$0xff]
  %v129 = vld [vmem:[%s1 + $0x390] sm:$0xff]
  %v130 = vld [vmem:[%s1 + $0x398] sm:$0xff]
  %v131 = vld [vmem:[%s1 + $0x3a0] sm:$0xff]
  %v132 = vld [vmem:[%s1 + $0x3a8] sm:$0xff]
  %v133 = vld [vmem:[%s1 + $0x3b0] sm:$0xff]
  %v134 = vld [vmem:[%s1 + $0x3b8] sm:$0xff]
  %v135 = vld [vmem:[%s1 + $0x3c0] sm:$0xff]
  %v136 = vld [vmem:[%s1 + $0x3c8] sm:$0xff]
  %v137 = vld [vmem:[%s1 + $0x3d0] sm:$0xff]
  %v138 = vld [vmem:[%s1 + $0x3d8] sm:$0xff]
  %v139 = vld [vmem:[%s1 + $0x3e0] sm:$0xff]
  %v140 = vld [vmem:[%s1 + $0x3e8] sm:$0xff]
  %v141 = vld [vmem:[%s1 + $0x3f0] sm:$0xff]
  %v142 = vld [vmem:[%s1 + $0x3f8] sm:$0xff]
  %143 = vmatprep.subr.mxu0 %v16
  %144 = vmatpush1.msra.mxu0 %v15
  %145 = vmatprep.subr.mxu0 %v18
  %146 = vmatpush1.msra.mxu0 %v17
  %147 = vmatprep.subr.mxu0 %v20
  %148 = vmatpush1.msra.mxu0 %v19
  %149 = vmatprep.subr.mxu0 %v22
  %150 = vmatpush1.msra.mxu0 %v21
  %151 = vmatprep.subr.mxu0 %v24
  %152 = vmatpush1.msra.mxu0 %v23
  %153 = vmatprep.subr.mxu0 %v26
  %154 = vmatpush1.msra.mxu0 %v25
  %155 = vmatprep.subr.mxu0 %v28
  %156 = vmatpush1.msra.mxu0 %v27
  %157 = vmatprep.subr.mxu0 %v30
  %158 = vmatpush1.msra.mxu0 %v29
  %159 = vmatprep.subr.mxu0 %v32
  %160 = vmatpush1.msra.mxu0 %v31
  %161 = vmatprep.subr.mxu0 %v34
  %162 = vmatpush1.msra.mxu0 %v33
  %163 = vmatprep.subr.mxu0 %v36
  %164 = vmatpush1.msra.mxu0 %v35
  %165 = vmatprep.subr.mxu0 %v38
  %166 = vmatpush1.msra.mxu0 %v37
  %167 = vmatprep.subr.mxu0 %v40
  %168 = vmatpush1.msra.mxu0 %v39
  %169 = vmatprep.subr.mxu0 %v42
  %170 = vmatpush1.msra.mxu0 %v41
  %171 = vmatprep.subr.mxu0 %v44
  %172 = vmatpush1.msra.mxu0 %v43
  %173 = vmatprep.subr.mxu0 %v46
  %174 = vmatpush1.msra.mxu0 %v45
  %175 = vmatprep.subr.mxu0 %v48
  %176 = vmatpush1.msra.mxu0 %v47
  %177 = vmatprep.subr.mxu0 %v50
  %178 = vmatpush1.msra.mxu0 %v49
  %179 = vmatprep.subr.mxu0 %v52
  %180 = vmatpush1.msra.mxu0 %v51
  %181 = vmatprep.subr.mxu0 %v54
  %182 = vmatpush1.msra.mxu0 %v53
  %183 = vmatprep.subr.mxu0 %v56
  %184 = vmatpush1.msra.mxu0 %v55
  %185 = vmatprep.subr.mxu0 %v58
  %186 = vmatpush1.msra.mxu0 %v57
  %187 = vmatprep.subr.mxu0 %v60
  %188 = vmatpush1.msra.mxu0 %v59
  %189 = vmatprep.subr.mxu0 %v62
  %190 = vmatpush1.msra.mxu0 %v61
  %191 = vmatprep.subr.mxu0 %v64
  %192 = vmatpush1.msra.mxu0 %v63
  %193 = vmatprep.subr.mxu0 %v66
  %194 = vmatpush1.msra.mxu0 %v65
  %195 = vmatprep.subr.mxu0 %v68
  %196 = vmatpush1.msra.mxu0 %v67
  %197 = vmatprep.subr.mxu0 %v70
  %198 = vmatpush1.msra.mxu0 %v69
  %199 = vmatprep.subr.mxu0 %v72
  %200 = vmatpush1.msra.mxu0 %v71
  %201 = vmatprep.subr.mxu0 %v74
  %202 = vmatpush1.msra.mxu0 %v73
  %203 = vmatprep.subr.mxu0 %v76
  %204 = vmatpush1.msra.mxu0 %v75
  %205 = vmatprep.subr.mxu0 %v78
  %206 = vmatpush1.msra.mxu0 %v77
  %207 = vmatprep.mubr.f32.mxu0 %v12
  %208 = vmatmul.mubr.f32.gmra.mrb[0].mxu0 %v11
  %v209 = vpop.f32.mrb[0].mxu0
  %v210 = vadd.f32 0.0, %v209
  %v211 = vpop.f32.mrb[0].mxu0
  %v212 = vadd.f32 0.0, %v211
  %213 = vdwg.mxu0
  %214 = vmatprep.subr.mxu0 %v80
  %215 = vmatpush1.msra.mxu0 %v79
  %216 = vmatprep.subr.mxu0 %v82
  %217 = vmatpush1.msra.mxu0 %v81
  %218 = vmatprep.subr.mxu0 %v84
  %219 = vmatpush1.msra.mxu0 %v83
  %220 = vmatprep.subr.mxu0 %v86
  %221 = vmatpush1.msra.mxu0 %v85
  %222 = vmatprep.subr.mxu0 %v88
  %223 = vmatpush1.msra.mxu0 %v87
  %224 = vmatprep.subr.mxu0 %v90
  %225 = vmatpush1.msra.mxu0 %v89
  %226 = vmatprep.subr.mxu0 %v92
  %227 = vmatpush1.msra.mxu0 %v91
  %228 = vmatprep.subr.mxu0 %v94
  %229 = vmatpush1.msra.mxu0 %v93
  %230 = vmatprep.subr.mxu0 %v96
  %231 = vmatpush1.msra.mxu0 %v95
  %232 = vmatprep.subr.mxu0 %v98
  %233 = vmatpush1.msra.mxu0 %v97
  %234 = vmatprep.subr.mxu0 %v100
  %235 = vmatpush1.msra.mxu0 %v99
  %236 = vmatprep.subr.mxu0 %v102
  %237 = vmatpush1.msra.mxu0 %v101
  %238 = vmatprep.subr.mxu0 %v104
  %239 = vmatpush1.msra.mxu0 %v103
  %240 = vmatprep.subr.mxu0 %v106
  %241 = vmatpush1.msra.mxu0 %v105
  %242 = vmatprep.subr.mxu0 %v108
  %243 = vmatpush1.msra.mxu0 %v107
  %244 = vmatprep.subr.mxu0 %v110
  %245 = vmatpush1.msra.mxu0 %v109
  %246 = vmatprep.subr.mxu0 %v112
  %247 = vmatpush1.msra.mxu0 %v111
  %248 = vmatprep.subr.mxu0 %v114
  %249 = vmatpush1.msra.mxu0 %v113
  %250 = vmatprep.subr.mxu0 %v116
  %251 = vmatpush1.msra.mxu0 %v115
  %252 = vmatprep.subr.mxu0 %v118
  %253 = vmatpush1.msra.mxu0 %v117
  %254 = vmatprep.subr.mxu0 %v120
  %255 = vmatpush1.msra.mxu0 %v119
  %256 = vmatprep.subr.mxu0 %v122
  %257 = vmatpush1.msra.mxu0 %v121
  %258 = vmatprep.subr.mxu0 %v124
  %259 = vmatpush1.msra.mxu0 %v123
  %260 = vmatprep.subr.mxu0 %v126
  %261 = vmatpush1.msra.mxu0 %v125
  %262 = vmatprep.subr.mxu0 %v128
  %263 = vmatpush1.msra.mxu0 %v127
  %264 = vmatprep.subr.mxu0 %v130
  %265 = vmatpush1.msra.mxu0 %v129
  %266 = vmatprep.subr.mxu0 %v132
  %267 = vmatpush1.msra.mxu0 %v131
  %268 = vmatprep.subr.mxu0 %v134
  %269 = vmatpush1.msra.mxu0 %v133
  %270 = vmatprep.subr.mxu0 %v136
  %271 = vmatpush1.msra.mxu0 %v135
  %272 = vmatprep.subr.mxu0 %v138
  %273 = vmatpush1.msra.mxu0 %v137
  %274 = vmatprep.subr.mxu0 %v140
  %275 = vmatpush1.msra.mxu0 %v139
  %276 = vmatprep.subr.mxu0 %v142
  %277 = vmatpush1.msra.mxu0 %v141
  %278 = vmatprep.mubr.f32.mxu0 %v14
  %279 = vmatmul.mubr.f32.gmra.mrb[0].mxu0 %v13
  %v280 = vpop.f32.mrb[0].mxu0
  %v281 = vadd.f32 %v210, %v280
  %v282 = vpop.f32.mrb[0].mxu0
  %v283 = vadd.f32 %v212, %v282
  %284 = vdwg.mxu0
  %285 = vst [vmem:[%s2] sm:$0xff] %v281
  %286 = vst [vmem:[%s2 + $0x8] sm:$0xff] %v283
  // Predicated region
  $region10: #{inverse_fourier_transform_layer.1} parent=0 // pred_check
    _
  $region11: #{inverse_fourier_transform_layer.1} parent=0 // pred_check_branch
    %288 = sbr.rel (0) target = $region13
  $region12: #{inverse_fourier_transform_layer.1} parent=0 // pred_region
    _
  $region13: #{inverse_fourier_transform_layer.1} parent=0 // pred_fallthru
    _
  // Predicated region
  $region14: #{inverse_fourier_transform_layer.1} parent=0 // pred_check
    _
  $region15: #{inverse_fourier_transform_layer.1} parent=0 // pred_check_branch
    %290 = sbr.rel (0) target = $region17
  $region16: #{inverse_fourier_transform_layer.1} parent=0 // pred_region
    _
  $region17: #{inverse_fourier_transform_layer.1} parent=0 // pred_fallthru
    _

</llo_original>
